<compile_context>
chip_gen: v5e
topology: v5e:2x2
jax: 0.10.0
libtpu: 0.0.40
codegen_flags: <defaults>
</compile_context>

<pallas_src>
import functools

import jax
import jax.numpy as jnp
from jax.experimental import pallas as pl
from jax.experimental.pallas import tpu as pltpu


def _primal_weighted_update_kernel(x_ref, y_ref, img_ref, w_ref, yh_ref, wh_ref,
                                   out_ref, *, tau: float, lam_tau: float,
                                   inv_denom: float, tile_rows: int,
                                   total_rows: int, halo_rows: int):
    tm, N = x_ref.shape
    i = pl.program_id(0)

    # Weighted dual variable x_w = y * w (elementwise, VPU).
    xw0 = y_ref[0] * w_ref[0]     # horizontal component, (tm, N)
    xw1 = y_ref[1] * w_ref[1]     # vertical component,   (tm, N)

    # Row of x_w[1] immediately above this tile (global row i*tm - 1).
    # For the first tile the value is arbitrary and masked out below.
    prev_row = (yh_ref[...] * wh_ref[...])[halo_rows - 1:halo_rows, :]   # (1, N)

    # Small iotas (broadcast inside the wheres) instead of full (tm, N) int32 planes.
    col = jax.lax.broadcasted_iota(jnp.int32, (1, N), 1)         # (1, N) lane index
    local_row = jax.lax.broadcasted_iota(jnp.int32, (tm, 1), 0)  # (tm, 1) sublane index
    row = local_row + i * tile_rows                              # global row index

    # Horizontal backward weighted divergence (tile is full-width: no column halo).
    sh0 = pltpu.roll(xw0, shift=1, axis=1)                       # XLU lane rotate
    div_h = jnp.where(col < N - 1, xw0, 0.0) - jnp.where(col > 0, sh0, 0.0)

    # Vertical backward weighted divergence: neighbor row from the sublane roll,
    # except the tile's first row which comes from the halo row.
    sh1 = pltpu.roll(xw1, shift=1, axis=0)                       # XLU sublane rotate
    sh1 = jnp.where(local_row == 0, prev_row, sh1)
    div_v = jnp.where(row < total_rows - 1, xw1, 0.0) - jnp.where(row > 0, sh1, 0.0)

    out_ref[...] = (x_ref[...] + tau * (div_h + div_v)
                    + lam_tau * img_ref[...]) * inv_denom


def _vmem_budget_bytes() -> int:
    """Half of physical VMEM (generation-aware), capped; safe fallback if query fails."""
    phys = 64 << 20      # conservative default (v7x physical VMEM per TC)
    try:
        info = pltpu.get_tpu_info()
        phys = int(getattr(info, "vmem_capacity_bytes", phys))
    except Exception:
        pass
    return int(min(phys // 2, 96 << 20))


def _pick_row_tile(M: int, N: int, itemsize: int, budget_bytes: int) -> int:
    """Largest multiple-of-8 row tile that divides M and fits the VMEM budget."""
    if M % 8 != 0 or M <= 8:
        return M          # single full block (block dims == array dims is always legal)
    # Per row of tile: 7 streamed buffers double-buffered + ~8 tile-sized temporaries.
    bytes_per_row = (2 * 7 + 8) * N * itemsize
    max_rows = max(8, budget_bytes // bytes_per_row)
    target = min(M, max_rows, 512)     # ~512-row tiles already reach ~85% of HBM roofline
    tm = M
    for t in range(8, M + 1, 8):
        if t > target:
            break
        if M % t == 0:
            tm = t
    return tm


def primal_weighted_update(x, y, img_obs, w, *, lambda_rof: float, tau: float,
                           row_tile=None):
    """x: [1,M,N], y: [2,M,N], img_obs: [1,M,N], w: [2,M,N]  ->  [1,M,N]."""
    assert x.shape[0] == 1 and img_obs.shape[0] == 1
    assert y.shape[0] == 2 and w.shape[0] == 2
    M, N = x.shape[-2], x.shape[-1]
    assert M >= 2 and N >= 2, "boundary formulas require M >= 2 and N >= 2"

    itemsize = jnp.dtype(x.dtype).itemsize
    budget = _vmem_budget_bytes()
    if row_tile is None:
        tm = _pick_row_tile(M, N, itemsize, budget)
    else:
        tm = int(row_tile)
        assert M % tm == 0 and (tm % 8 == 0 or tm == M), "bad row_tile"
    nblk = M // tm
    hr = min(8, M)                      # halo block sublane size
    blk_per_tile = max(tm // hr, 1)     # 8-row groups per row tile

    lam_tau = float(lambda_rof) * float(tau)
    inv_denom = 1.0 / (1.0 + lam_tau)
    kernel = functools.partial(
        _primal_weighted_update_kernel,
        tau=float(tau), lam_tau=lam_tau, inv_denom=inv_denom,
        tile_rows=tm, total_rows=M, halo_rows=hr)

    # Lane-dense, full-width blocks; row axis tiled.
    row_spec = pl.BlockSpec((tm, N), lambda i: (i, 0))             # x, img_obs, out
    ch_spec = pl.BlockSpec((2, tm, N), lambda i: (0, i, 0))        # y, w (both channels)
    # 1-row halo: the 8-row group of channel 1 containing global row i*tm - 1
    # (clamped to group 0 for the first tile, where it is masked out anyway).
    halo_spec = pl.BlockSpec(
        (None, hr, N),
        lambda i: (1, jnp.maximum(i * blk_per_tile - 1, 0), 0))

    flops = 12 * M * N
    bytes_accessed = (7 * M * N + 2 * hr * N * nblk) * itemsize

    out = pl.pallas_call(
        kernel,
        out_shape=jax.ShapeDtypeStruct((M, N), x.dtype),
        grid=(nblk,),
        in_specs=[row_spec, ch_spec, row_spec, ch_spec, halo_spec, halo_spec],
        out_specs=row_spec,
        compiler_params=pltpu.CompilerParams(
            dimension_semantics=("parallel",),
            vmem_limit_bytes=int(budget)),
        cost_estimate=pl.CostEstimate(flops=flops, transcendentals=0,
                                      bytes_accessed=bytes_accessed),
    )(x[0], y, img_obs[0], w, y, w)
    return out[None, :, :]


def _reference(x, y, img_obs, w, *, lambda_rof, tau):
    """Pure-JAX reference mirroring the PyTorch BackwardWeightedDivergence."""
    xw = y * w
    M, N = x.shape[-2], x.shape[-1]
    div = jnp.zeros((M, N), x.dtype)
    # horizontal
    div = div.at[:, 1:-1].set(xw[0, :, 1:-1] - xw[0, :, 0:-2])
    div = div.at[:, 0].set(xw[0, :, 0])
    div = div.at[:, -1].set(-xw[0, :, -2])
    # vertical
    div = div.at[1:-1, :].add(xw[1, 1:-1, :] - xw[1, 0:-2, :])
    div = div.at[0, :].add(xw[1, 0, :])
    div = div.at[-1, :].add(-xw[1, -2, :])
    return (x + tau * div[None] + lambda_rof * tau * img_obs) / (1.0 + lambda_rof * tau)


if __name__ == "__main__":
    lambda_rof = 7.0
    tau = 0.01

    # Small but lane-dense image (N multiple of 128 avoids masked partial stores).
    M, N = 64, 256
    key = jax.random.PRNGKey(0)
    kx, ky, kimg, kw = jax.random.split(key, 4)
    x = jax.random.normal(kx, (1, M, N), dtype=jnp.float32)
    y = jax.random.normal(ky, (2, M, N), dtype=jnp.float32)
    img_obs = jax.random.normal(kimg, (1, M, N), dtype=jnp.float32)
    w = jax.random.uniform(kw, (2, M, N), dtype=jnp.float32)

    ref = _reference(x, y, img_obs, w, lambda_rof=lambda_rof, tau=tau)

    # 1) default (auto-chosen) row tiling
    out = primal_weighted_update(x, y, img_obs, w, lambda_rof=lambda_rof, tau=tau)
    out = jax.block_until_ready(out)
    assert out.shape == (1, M, N)
    assert jnp.allclose(out, ref, atol=1e-5, rtol=1e-5), "mismatch vs reference (auto tile)"

    # 2) forced multi-tile path: exercises the cross-tile row halo and global-row masks
    out_tiled = primal_weighted_update(x, y, img_obs, w, lambda_rof=lambda_rof, tau=tau,
                                       row_tile=16)
    out_tiled = jax.block_until_ready(out_tiled)
    assert jnp.allclose(out_tiled, ref, atol=1e-5, rtol=1e-5), "mismatch vs reference (tiled)"

    print("KERNEL_OK")
</pallas_src>

<mosaic_0001>
module attributes {stable_mosaic.version = 11 : i64} {
  func.func @_primal_weighted_update_kernel(%arg0: i32, %arg1: memref<64x256xf32, #tpu.memory_space<vmem>>, %arg2: memref<2x64x256xf32, #tpu.memory_space<vmem>>, %arg3: memref<64x256xf32, #tpu.memory_space<vmem>>, %arg4: memref<2x64x256xf32, #tpu.memory_space<vmem>>, %arg5: memref<1x8x256xf32, #tpu.memory_space<vmem>>, %arg6: memref<1x8x256xf32, #tpu.memory_space<vmem>>, %arg7: memref<64x256xf32, #tpu.memory_space<vmem>>) attributes {dimension_semantics = [#tpu.dimension_semantics<parallel>], iteration_bounds = array<i64: 1>, scalar_prefetch = 0 : i64, scratch_operands = 0 : i64, tpu.core_type = #tpu.core_type<tc>, window_params = [{transform_indices = @transform_0, window_bounds = array<i64: 64, 256>}, {transform_indices = @transform_1, window_bounds = array<i64: 2, 64, 256>}, {transform_indices = @transform_2, window_bounds = array<i64: 64, 256>}, {transform_indices = @transform_3, window_bounds = array<i64: 2, 64, 256>}, {transform_indices = @transform_4, window_bounds = array<i64: 1, 8, 256>}, {transform_indices = @transform_5, window_bounds = array<i64: 1, 8, 256>}, {transform_indices = @transform_6, window_bounds = array<i64: 64, 256>}]} {
    %c0 = arith.constant 0 : index
    %c0_0 = arith.constant 0 : index
    %c0_1 = arith.constant 0 : index
    %0 = vector.load %arg2[%c0, %c0_0, %c0_1] : memref<2x64x256xf32, #tpu.memory_space<vmem>>, vector<1x64x256xf32>
    %1 = vector.shape_cast %0 : vector<1x64x256xf32> to vector<64x256xf32>
    %c0_2 = arith.constant 0 : index
    %c0_3 = arith.constant 0 : index
    %c0_4 = arith.constant 0 : index
    %2 = vector.load %arg4[%c0_2, %c0_3, %c0_4] : memref<2x64x256xf32, #tpu.memory_space<vmem>>, vector<1x64x256xf32>
    %3 = vector.shape_cast %2 : vector<1x64x256xf32> to vector<64x256xf32>
    %4 = arith.mulf %1, %3 : vector<64x256xf32>
    %c1 = arith.constant 1 : index
    %c0_5 = arith.constant 0 : index
    %c0_6 = arith.constant 0 : index
    %5 = vector.load %arg2[%c1, %c0_5, %c0_6] : memref<2x64x256xf32, #tpu.memory_space<vmem>>, vector<1x64x256xf32>
    %6 = vector.shape_cast %5 : vector<1x64x256xf32> to vector<64x256xf32>
    %c1_7 = arith.constant 1 : index
    %c0_8 = arith.constant 0 : index
    %c0_9 = arith.constant 0 : index
    %7 = vector.load %arg4[%c1_7, %c0_8, %c0_9] : memref<2x64x256xf32, #tpu.memory_space<vmem>>, vector<1x64x256xf32>
    %8 = vector.shape_cast %7 : vector<1x64x256xf32> to vector<64x256xf32>
    %9 = arith.mulf %6, %8 : vector<64x256xf32>
    %c0_10 = arith.constant 0 : index
    %c0_11 = arith.constant 0 : index
    %c0_12 = arith.constant 0 : index
    %10 = vector.load %arg5[%c0_10, %c0_11, %c0_12] : memref<1x8x256xf32, #tpu.memory_space<vmem>>, vector<1x8x256xf32>
    %11 = vector.shape_cast %10 : vector<1x8x256xf32> to vector<8x256xf32>
    %c0_13 = arith.constant 0 : index
    %c0_14 = arith.constant 0 : index
    %c0_15 = arith.constant 0 : index
    %12 = vector.load %arg6[%c0_13, %c0_14, %c0_15] : memref<1x8x256xf32, #tpu.memory_space<vmem>>, vector<1x8x256xf32>
    %13 = vector.shape_cast %12 : vector<1x8x256xf32> to vector<8x256xf32>
    %14 = arith.mulf %11, %13 : vector<8x256xf32>
    %15 = vector.extract_strided_slice %14 {offsets = [7, 0], sizes = [1, 256], strides = [1, 1]} : vector<8x256xf32> to vector<1x256xf32>
    %16 = tpu.iota {dimensions = array<i32: 1>} : vector<1x256xi32>
    %17 = tpu.iota {dimensions = array<i32: 0>} : vector<64x1xi32>
    %c64_i32 = arith.constant 64 : i32
    %18 = arith.muli %arg0, %c64_i32 : i32
    %19 = vector.broadcast %18 : i32 to vector<64x1xi32>
    %20 = arith.addi %17, %19 : vector<64x1xi32>
    %c1_i32 = arith.constant 1 : i32
    %21 = tpu.dynamic_rotate %4 by %c1_i32 dim 1 : vector<64x256xf32>, i32 -> vector<64x256xf32>
    %c255_i32 = arith.constant 255 : i32
    %22 = vector.broadcast %c255_i32 : i32 to vector<1x256xi32>
    %23 = arith.cmpi slt, %16, %22 : vector<1x256xi32>
    %cst = arith.constant 0.000000e+00 : f32
    %24 = vector.shape_cast %23 : vector<1x256xi1> to vector<1x256xi1>
    %25 = vector.broadcast %24 : vector<1x256xi1> to vector<64x256xi1>
    %26 = vector.broadcast %cst : f32 to vector<64x256xf32>
    %27 = arith.select %25, %4, %26 : vector<64x256xi1>, vector<64x256xf32>
    %c0_i32 = arith.constant 0 : i32
    %28 = vector.broadcast %c0_i32 : i32 to vector<1x256xi32>
    %29 = arith.cmpi sgt, %16, %28 : vector<1x256xi32>
    %cst_16 = arith.constant 0.000000e+00 : f32
    %30 = vector.shape_cast %29 : vector<1x256xi1> to vector<1x256xi1>
    %31 = vector.broadcast %30 : vector<1x256xi1> to vector<64x256xi1>
    %32 = vector.broadcast %cst_16 : f32 to vector<64x256xf32>
    %33 = arith.select %31, %21, %32 : vector<64x256xi1>, vector<64x256xf32>
    %34 = arith.subf %27, %33 : vector<64x256xf32>
    %c1_i32_17 = arith.constant 1 : i32
    %35 = tpu.dynamic_rotate %9 by %c1_i32_17 dim 0 : vector<64x256xf32>, i32 -> vector<64x256xf32>
    %c0_i32_18 = arith.constant 0 : i32
    %36 = vector.broadcast %c0_i32_18 : i32 to vector<64x1xi32>
    %37 = arith.cmpi eq, %17, %36 : vector<64x1xi32>
    %38 = vector.shape_cast %37 : vector<64x1xi1> to vector<64x1xi1>
    %39 = vector.broadcast %38 : vector<64x1xi1> to vector<64x256xi1>
    %40 = vector.shape_cast %15 : vector<1x256xf32> to vector<1x256xf32>
    %41 = vector.broadcast %40 : vector<1x256xf32> to vector<64x256xf32>
    %42 = arith.select %39, %41, %35 : vector<64x256xi1>, vector<64x256xf32>
    %c63_i32 = arith.constant 63 : i32
    %43 = vector.broadcast %c63_i32 : i32 to vector<64x1xi32>
    %44 = arith.cmpi slt, %20, %43 : vector<64x1xi32>
    %cst_19 = arith.constant 0.000000e+00 : f32
    %45 = vector.shape_cast %44 : vector<64x1xi1> to vector<64x1xi1>
    %46 = vector.broadcast %45 : vector<64x1xi1> to vector<64x256xi1>
    %47 = vector.broadcast %cst_19 : f32 to vector<64x256xf32>
    %48 = arith.select %46, %9, %47 : vector<64x256xi1>, vector<64x256xf32>
    %c0_i32_20 = arith.constant 0 : i32
    %49 = vector.broadcast %c0_i32_20 : i32 to vector<64x1xi32>
    %50 = arith.cmpi sgt, %20, %49 : vector<64x1xi32>
    %cst_21 = arith.constant 0.000000e+00 : f32
    %51 = vector.shape_cast %50 : vector<64x1xi1> to vector<64x1xi1>
    %52 = vector.broadcast %51 : vector<64x1xi1> to vector<64x256xi1>
    %53 = vector.broadcast %cst_21 : f32 to vector<64x256xf32>
    %54 = arith.select %52, %42, %53 : vector<64x256xi1>, vector<64x256xf32>
    %55 = arith.subf %48, %54 : vector<64x256xf32>
    %c0_22 = arith.constant 0 : index
    %c0_23 = arith.constant 0 : index
    %56 = vector.load %arg1[%c0_22, %c0_23] : memref<64x256xf32, #tpu.memory_space<vmem>>, vector<64x256xf32>
    %57 = arith.addf %34, %55 : vector<64x256xf32>
    %cst_24 = arith.constant 0.00999999977 : f32
    %58 = vector.broadcast %cst_24 : f32 to vector<64x256xf32>
    %59 = arith.mulf %58, %57 : vector<64x256xf32>
    %60 = arith.addf %56, %59 : vector<64x256xf32>
    %c0_25 = arith.constant 0 : index
    %c0_26 = arith.constant 0 : index
    %61 = vector.load %arg3[%c0_25, %c0_26] : memref<64x256xf32, #tpu.memory_space<vmem>>, vector<64x256xf32>
    %cst_27 = arith.constant 7.000000e-02 : f32
    %62 = vector.broadcast %cst_27 : f32 to vector<64x256xf32>
    %63 = arith.mulf %62, %61 : vector<64x256xf32>
    %64 = arith.addf %60, %63 : vector<64x256xf32>
    %cst_28 = arith.constant 0.934579432 : f32
    %65 = vector.broadcast %cst_28 : f32 to vector<64x256xf32>
    %66 = arith.mulf %64, %65 : vector<64x256xf32>
    %c0_29 = arith.constant 0 : index
    %c0_30 = arith.constant 0 : index
    %67 = vector.load %arg7[%c0_29, %c0_30] : memref<64x256xf32, #tpu.memory_space<vmem>>, vector<64x256xf32>
    tpu.vector_store %arg7[%c0_29, %c0_30], %66 {strides = array<i32>} : memref<64x256xf32, #tpu.memory_space<vmem>>, vector<64x256xf32>,
    return
  }
  func.func @transform_0(%arg0: i32) -> (i32, i32) {
    %c0_i32 = arith.constant 0 : i32
    %c0_i32_0 = arith.constant 0 : i32
    return %arg0, %c0_i32 : i32, i32
  }
  func.func @transform_1(%arg0: i32) -> (i32, i32, i32) {
    %c0_i32 = arith.constant 0 : i32
    %c0_i32_0 = arith.constant 0 : i32
    %c0_i32_1 = arith.constant 0 : i32
    return %c0_i32, %arg0, %c0_i32_0 : i32, i32, i32
  }
  func.func @transform_2(%arg0: i32) -> (i32, i32) {
    %c0_i32 = arith.constant 0 : i32
    %c0_i32_0 = arith.constant 0 : i32
    return %arg0, %c0_i32 : i32, i32
  }
  func.func @transform_3(%arg0: i32) -> (i32, i32, i32) {
    %c0_i32 = arith.constant 0 : i32
    %c0_i32_0 = arith.constant 0 : i32
    %c0_i32_1 = arith.constant 0 : i32
    return %c0_i32, %arg0, %c0_i32_0 : i32, i32, i32
  }
  func.func @transform_4(%arg0: i32) -> (i32, i32, i32) {
    %c8_i32 = arith.constant 8 : i32
    %0 = arith.muli %arg0, %c8_i32 : i32
    %c1_i32 = arith.constant 1 : i32
    %1 = arith.subi %0, %c1_i32 : i32
    %c0_i32 = arith.constant 0 : i32
    %2 = arith.maxsi %1, %c0_i32 : i32
    %c1_i32_0 = arith.constant 1 : i32
    %c0_i32_1 = arith.constant 0 : i32
    %c0_i32_2 = arith.constant 0 : i32
    return %c1_i32_0, %2, %c0_i32_1 : i32, i32, i32
  }
  func.func @transform_5(%arg0: i32) -> (i32, i32, i32) {
    %c8_i32 = arith.constant 8 : i32
    %0 = arith.muli %arg0, %c8_i32 : i32
    %c1_i32 = arith.constant 1 : i32
    %1 = arith.subi %0, %c1_i32 : i32
    %c0_i32 = arith.constant 0 : i32
    %2 = arith.maxsi %1, %c0_i32 : i32
    %c1_i32_0 = arith.constant 1 : i32
    %c0_i32_1 = arith.constant 0 : i32
    %c0_i32_2 = arith.constant 0 : i32
    return %c1_i32_0, %2, %c0_i32_1 : i32, i32, i32
  }
  func.func @transform_6(%arg0: i32) -> (i32, i32) {
    %c0_i32 = arith.constant 0 : i32
    %c0_i32_0 = arith.constant 0 : i32
    return %arg0, %c0_i32 : i32, i32
  }
}

</mosaic_0001>

<llo_original>
// kernel: tpu_custom_call.1
$region0: #{tpu_custom_call.1}
  #allocation0 [shape = 'u32[]', space=smem, size = 0x4, offset = 0x4, fixed_abs, tag = 'smem constant byte address 0x4 - core index']
  #allocation1 [shape = 'u32[72,128]{1,0:T(1,128)}', space=vmem, size = 0x9000, scoped, tag = 'internal scratch']
  %s0 = inlined_call_operand.hbm [shape: f32[64,256], index: 0, kind: input, shape index: {}]
  %s1 = inlined_call_operand.hbm [shape: f32[2,64,256], index: 1, kind: input, shape index: {}]
  %s2 = inlined_call_operand.hbm [shape: f32[64,256], index: 2, kind: input, shape index: {}]
  %s3 = inlined_call_operand.hbm [shape: f32[2,64,256], index: 3, kind: input, shape index: {}]
  %s4 = inlined_call_operand.hbm [shape: f32[2,64,256], index: 4, kind: input, shape index: {}]
  %s5 = inlined_call_operand.hbm [shape: f32[2,64,256], index: 5, kind: input, shape index: {}]
  %s6 = inlined_call_operand.hbm [shape: f32[64,256], index: 6, kind: output, shape index: {}]
  %s7 = sld [smem:[#allocation0]]
  $region58: #{tpu_custom_call.1} parent=0
    _
  %s9 = ssub.s32 1, %s7
  %s10 = scalar_select 0, %s9, %s7
  $region1: #{tpu_custom_call.1} parent=0
    #allocation2 [shape = 'u8[65536]{0}', space=vmem, size = 0x10000, scoped, tag = 'input window, operand 0, single buffered']
    #allocation3 [shape = 's32[1]{0}', space=sflag, size = 0x4, scoped, tag = 'scoped memory for tpu_custom_call.1']
    #allocation4 [shape = 's32[1]{0}', space=sflag, size = 0x4, scoped, tag = 'scoped memory for tpu_custom_call.1']
    #allocation5 [shape = 'u8[131072]{0}', space=vmem, size = 0x20000, scoped, tag = 'input window, operand 1, single buffered']
    #allocation6 [shape = 's32[1]{0}', space=sflag, size = 0x4, scoped, tag = 'scoped memory for tpu_custom_call.1']
    #allocation7 [shape = 'u8[65536]{0}', space=vmem, size = 0x10000, scoped, tag = 'input window, operand 2, single buffered']
    #allocation8 [shape = 'u8[131072]{0}', space=vmem, size = 0x20000, scoped, tag = 'input window, operand 3, single buffered']
    #allocation9 [shape = 's32[1]{0}', space=sflag, size = 0x4, scoped, tag = 'scoped memory for tpu_custom_call.1']
    #allocation10 [shape = 'u8[8192]{0}', space=vmem, size = 0x2000, scoped, tag = 'input window, operand 4, single buffered']
    #allocation11 [shape = 'u8[8192]{0}', space=vmem, size = 0x2000, scoped, tag = 'input window, operand 5, single buffered']
    #allocation12 [shape = 's32[1]{0}', space=sflag, size = 0x4, scoped, tag = 'scoped memory for tpu_custom_call.1']
    #allocation13 [shape = 'u8[65536]{0}', space=vmem, size = 0x10000, scoped, tag = 'output window, operand 0, single buffered']
    %11 = vsyncpa [#allocation3], 0
    %12 = vsyncpa [#allocation6], 0
    %13 = vsyncpa [#allocation9], 0
    %14 = vsyncpa [#allocation12], 0
    %15 = vsyncpa [#allocation4], 0
    // Predicated region
    $region2: #{tpu_custom_call.1} parent=1 // pred_check
      _
    $region3: #{tpu_custom_call.1} parent=1 // pred_check_branch
      %17 = sbr.rel (0) target = $region5
    $region4: #{tpu_custom_call.1} parent=1 // pred_region
      %19 = vsyncadd [#allocation3], 0
      %s20 = sshll.u32 %s0, 4
      %s21 = int_to_ptr.hbm [resolvable:$true] %s20
      %s22 = sshll.u32 [#allocation2], 4
      %s23 = int_to_ptr.vmem [resolvable:$true] %s22
      %28 = dma.hbm_to_vmem [thread:$0]  %s21, 2048, %s23, [#allocation3], 256, 256, 16
    $region5: #{tpu_custom_call.1} parent=1 // pred_fallthru
      _
    // Predicated region
    $region6: #{tpu_custom_call.1} parent=1 // pred_check
      _
    $region7: #{tpu_custom_call.1} parent=1 // pred_check_branch
      %30 = sbr.rel (0) target = $region9
    $region8: #{tpu_custom_call.1} parent=1 // pred_region
      %32 = vsyncadd [#allocation6], 0
      %s33 = sshll.u32 %s1, 4
      %s34 = int_to_ptr.hbm [resolvable:$true] %s33
      %s35 = sshll.u32 [#allocation5], 4
      %s36 = int_to_ptr.vmem [resolvable:$true] %s35
      %41 = dma.hbm_to_vmem [thread:$0]  %s34, 4096, %s36, [#allocation6], 256, 256, 16
    $region9: #{tpu_custom_call.1} parent=1 // pred_fallthru
      _
    // Predicated region
    $region10: #{tpu_custom_call.1} parent=1 // pred_check
      _
    $region11: #{tpu_custom_call.1} parent=1 // pred_check_branch
      %43 = sbr.rel (0) target = $region13
    $region12: #{tpu_custom_call.1} parent=1 // pred_region
      %45 = vsyncadd [#allocation6], 0
      %s46 = sshll.u32 %s2, 4
      %s47 = int_to_ptr.hbm [resolvable:$true] %s46
      %s48 = sshll.u32 [#allocation7], 4
      %s49 = int_to_ptr.vmem [resolvable:$true] %s48
      %54 = dma.hbm_to_vmem [thread:$0]  %s47, 2048, %s49, [#allocation6], 256, 256, 16
    $region13: #{tpu_custom_call.1} parent=1 // pred_fallthru
      _
    // Predicated region
    $region14: #{tpu_custom_call.1} parent=1 // pred_check
      _
    $region15: #{tpu_custom_call.1} parent=1 // pred_check_branch
      %56 = sbr.rel (0) target = $region17
    $region16: #{tpu_custom_call.1} parent=1 // pred_region
      %58 = vsyncadd [#allocation9], 0
      %s59 = sshll.u32 %s3, 4
      %s60 = int_to_ptr.hbm [resolvable:$true] %s59
      %s61 = sshll.u32 [#allocation8], 4
      %s62 = int_to_ptr.vmem [resolvable:$true] %s61
      %67 = dma.hbm_to_vmem [thread:$0]  %s60, 4096, %s62, [#allocation9], 256, 256, 16
    $region17: #{tpu_custom_call.1} parent=1 // pred_fallthru
      _
    // Predicated region
    $region18: #{tpu_custom_call.1} parent=1 // pred_check
      _
    $region19: #{tpu_custom_call.1} parent=1 // pred_check_branch
      %69 = sbr.rel (0) target = $region21
    $region20: #{tpu_custom_call.1} parent=1 // pred_region
      %s70 = smul.u32 0, 8
      %s71 = ssub.s32 %s70, 1
      %p72 = scmp.gt.s32.totalorder %s71, 0
      %s73 = scalar_select %p72, %s71, 0
      %75 = vsyncadd [#allocation9], 0
      %s76 = smul.addr %s73, 2
      %s77 = sadd.s32 %s76, 16
      %s78 = smul.addr %s77, 8
      %s79 = scalar_lea.hbm %s4, %s78
      %s81 = sshll.u32 %s79, 4
      %s82 = int_to_ptr.hbm [resolvable:$true] %s81
      %s83 = sshll.u32 [#allocation10], 4
      %s84 = int_to_ptr.vmem [resolvable:$true] %s83
      %86 = dma.hbm_to_vmem [thread:$0]  %s82, 256, %s84, [#allocation9]
    $region21: #{tpu_custom_call.1} parent=1 // pred_fallthru
      _
    // Predicated region
    $region22: #{tpu_custom_call.1} parent=1 // pred_check
      _
    $region23: #{tpu_custom_call.1} parent=1 // pred_check_branch
      %88 = sbr.rel (0) target = $region25
    $region24: #{tpu_custom_call.1} parent=1 // pred_region
      %s89 = smul.u32 0, 8
      %s90 = ssub.s32 %s89, 1
      %p91 = scmp.gt.s32.totalorder %s90, 0
      %s92 = scalar_select %p91, %s90, 0
      %94 = vsyncadd [#allocation12], 0
      %s95 = smul.addr %s92, 2
      %s96 = sadd.s32 %s95, 16
      %s97 = smul.addr %s96, 8
      %s98 = scalar_lea.hbm %s5, %s97
      %s100 = sshll.u32 %s98, 4
      %s101 = int_to_ptr.hbm [resolvable:$true] %s100
      %s102 = sshll.u32 [#allocation11], 4
      %s103 = int_to_ptr.vmem [resolvable:$true] %s102
      %105 = dma.hbm_to_vmem [thread:$0]  %s101, 256, %s103, [#allocation12]
    $region25: #{tpu_custom_call.1} parent=1 // pred_fallthru
      _
    // Predicated region
    $region26: #{tpu_custom_call.1} parent=1 // pred_check
      _
    $region27: #{tpu_custom_call.1} parent=1 // pred_check_branch
      %107 = sbr.rel (0) target = $region29
    $region28: #{tpu_custom_call.1} parent=1 // pred_region
      %109 = dma.done [#allocation3], 2048
    $region29: #{tpu_custom_call.1} parent=1 // pred_fallthru
      _
    // Predicated region
    $region30: #{tpu_custom_call.1} parent=1 // pred_check
      _
    $region31: #{tpu_custom_call.1} parent=1 // pred_check_branch
      %111 = sbr.rel (0) target = $region33
    $region32: #{tpu_custom_call.1} parent=1 // pred_region
      %113 = dma.done [#allocation6], 4096
    $region33: #{tpu_custom_call.1} parent=1 // pred_fallthru
      _
    // Predicated region
    $region34: #{tpu_custom_call.1} parent=1 // pred_check
      _
    $region35: #{tpu_custom_call.1} parent=1 // pred_check_branch
      %115 = sbr.rel (0) target = $region37
    $region36: #{tpu_custom_call.1} parent=1 // pred_region
      %117 = dma.done [#allocation6], 2048
    $region37: #{tpu_custom_call.1} parent=1 // pred_fallthru
      _
    // Predicated region
    $region38: #{tpu_custom_call.1} parent=1 // pred_check
      _
    $region39: #{tpu_custom_call.1} parent=1 // pred_check_branch
      %119 = sbr.rel (0) target = $region41
    $region40: #{tpu_custom_call.1} parent=1 // pred_region
      %121 = dma.done [#allocation9], 4096
    $region41: #{tpu_custom_call.1} parent=1 // pred_fallthru
      _
    // Predicated region
    $region42: #{tpu_custom_call.1} parent=1 // pred_check
      _
    $region43: #{tpu_custom_call.1} parent=1 // pred_check_branch
      %123 = sbr.rel (0) target = $region45
    $region44: #{tpu_custom_call.1} parent=1 // pred_region
      %125 = dma.done [#allocation9], 256
    $region45: #{tpu_custom_call.1} parent=1 // pred_fallthru
      _
    // Predicated region
    $region46: #{tpu_custom_call.1} parent=1 // pred_check
      _
    $region47: #{tpu_custom_call.1} parent=1 // pred_check_branch
      %127 = sbr.rel (0) target = $region49
    $region48: #{tpu_custom_call.1} parent=1 // pred_region
      %129 = dma.done [#allocation12], 256
    $region49: #{tpu_custom_call.1} parent=1 // pred_fallthru
      _
    %s130 = smul.u32 0, 8
    %s131 = ssub.s32 %s130, 1
    %p132 = scmp.gt.s32.totalorder %s131, 0
    %s133 = scalar_select %p132, %s131, 0
    %s134 = smul.u32 0, 8
    %s135 = ssub.s32 %s134, 1
    %p136 = scmp.gt.s32.totalorder %s135, 0
    %s137 = scalar_select %p136, %s135, 0
    %v138 = vld [vmem:[#allocation5] sm:$0xff]
    %v139 = vld [vmem:[#allocation5 + $0x8] sm:$0xff]
    %v140 = vld [vmem:[#allocation5 + $0x10] sm:$0xff]
    %v141 = vld [vmem:[#allocation5 + $0x18] sm:$0xff]
    %v142 = vld [vmem:[#allocation5 + $0x20] sm:$0xff]
    %v143 = vld [vmem:[#allocation5 + $0x28] sm:$0xff]
    %v144 = vld [vmem:[#allocation5 + $0x30] sm:$0xff]
    %v145 = vld [vmem:[#allocation5 + $0x38] sm:$0xff]
    %v146 = vld [vmem:[#allocation5 + $0x40] sm:$0xff]
    %v147 = vld [vmem:[#allocation5 + $0x48] sm:$0xff]
    %v148 = vld [vmem:[#allocation5 + $0x50] sm:$0xff]
    %v149 = vld [vmem:[#allocation5 + $0x58] sm:$0xff]
    %v150 = vld [vmem:[#allocation5 + $0x60] sm:$0xff]
    %v151 = vld [vmem:[#allocation5 + $0x68] sm:$0xff]
    %v152 = vld [vmem:[#allocation5 + $0x70] sm:$0xff]
    %v153 = vld [vmem:[#allocation5 + $0x78] sm:$0xff]
    %v154 = vld [vmem:[#allocation8] sm:$0xff]
    %v155 = vld [vmem:[#allocation8 + $0x8] sm:$0xff]
    %v156 = vld [vmem:[#allocation8 + $0x10] sm:$0xff]
    %v157 = vld [vmem:[#allocation8 + $0x18] sm:$0xff]
    %v158 = vld [vmem:[#allocation8 + $0x20] sm:$0xff]
    %v159 = vld [vmem:[#allocation8 + $0x28] sm:$0xff]
    %v160 = vld [vmem:[#allocation8 + $0x30] sm:$0xff]
    %v161 = vld [vmem:[#allocation8 + $0x38] sm:$0xff]
    %v162 = vld [vmem:[#allocation8 + $0x40] sm:$0xff]
    %v163 = vld [vmem:[#allocation8 + $0x48] sm:$0xff]
    %v164 = vld [vmem:[#allocation8 + $0x50] sm:$0xff]
    %v165 = vld [vmem:[#allocation8 + $0x58] sm:$0xff]
    %v166 = vld [vmem:[#allocation8 + $0x60] sm:$0xff]
    %v167 = vld [vmem:[#allocation8 + $0x68] sm:$0xff]
    %v168 = vld [vmem:[#allocation8 + $0x70] sm:$0xff]
    %v169 = vld [vmem:[#allocation8 + $0x78] sm:$0xff]
    %v170 = vmul.f32 %v138, %v154
    %v171 = vmul.f32 %v139, %v155
    %v172 = vmul.f32 %v140, %v156
    %v173 = vmul.f32 %v141, %v157
    %v174 = vmul.f32 %v142, %v158
    %v175 = vmul.f32 %v143, %v159
    %v176 = vmul.f32 %v144, %v160
    %v177 = vmul.f32 %v145, %v161
    %v178 = vmul.f32 %v146, %v162
    %v179 = vmul.f32 %v147, %v163
    %v180 = vmul.f32 %v148, %v164
    %v181 = vmul.f32 %v149, %v165
    %v182 = vmul.f32 %v150, %v166
    %v183 = vmul.f32 %v151, %v167
    %v184 = vmul.f32 %v152, %v168
    %v185 = vmul.f32 %v153, %v169
    %s186 = scalar_lea.vmem [#allocation5], 128
    %v187 = vld [vmem:[%s186] sm:$0xff]
    %v188 = vld [vmem:[%s186 + $0x8] sm:$0xff]
    %v189 = vld [vmem:[%s186 + $0x10] sm:$0xff]
    %v190 = vld [vmem:[%s186 + $0x18] sm:$0xff]
    %v191 = vld [vmem:[%s186 + $0x20] sm:$0xff]
    %v192 = vld [vmem:[%s186 + $0x28] sm:$0xff]
    %v193 = vld [vmem:[%s186 + $0x30] sm:$0xff]
    %v194 = vld [vmem:[%s186 + $0x38] sm:$0xff]
    %v195 = vld [vmem:[%s186 + $0x40] sm:$0xff]
    %v196 = vld [vmem:[%s186 + $0x48] sm:$0xff]
    %v197 = vld [vmem:[%s186 + $0x50] sm:$0xff]
    %v198 = vld [vmem:[%s186 + $0x58] sm:$0xff]
    %v199 = vld [vmem:[%s186 + $0x60] sm:$0xff]
    %v200 = vld [vmem:[%s186 + $0x68] sm:$0xff]
    %v201 = vld [vmem:[%s186 + $0x70] sm:$0xff]
    %v202 = vld [vmem:[%s186 + $0x78] sm:$0xff]
    %s203 = scalar_lea.vmem [#allocation8], 128
    %v204 = vld [vmem:[%s203] sm:$0xff]
    %v205 = vld [vmem:[%s203 + $0x8] sm:$0xff]
    %v206 = vld [vmem:[%s203 + $0x10] sm:$0xff]
    %v207 = vld [vmem:[%s203 + $0x18] sm:$0xff]
    %v208 = vld [vmem:[%s203 + $0x20] sm:$0xff]
    %v209 = vld [vmem:[%s203 + $0x28] sm:$0xff]
    %v210 = vld [vmem:[%s203 + $0x30] sm:$0xff]
    %v211 = vld [vmem:[%s203 + $0x38] sm:$0xff]
    %v212 = vld [vmem:[%s203 + $0x40] sm:$0xff]
    %v213 = vld [vmem:[%s203 + $0x48] sm:$0xff]
    %v214 = vld [vmem:[%s203 + $0x50] sm:$0xff]
    %v215 = vld [vmem:[%s203 + $0x58] sm:$0xff]
    %v216 = vld [vmem:[%s203 + $0x60] sm:$0xff]
    %v217 = vld [vmem:[%s203 + $0x68] sm:$0xff]
    %v218 = vld [vmem:[%s203 + $0x70] sm:$0xff]
    %v219 = vld [vmem:[%s203 + $0x78] sm:$0xff]
    %v220 = vmul.f32 %v187, %v204
    %v221 = vmul.f32 %v188, %v205
    %v222 = vmul.f32 %v189, %v206
    %v223 = vmul.f32 %v190, %v207
    %v224 = vmul.f32 %v191, %v208
    %v225 = vmul.f32 %v192, %v209
    %v226 = vmul.f32 %v193, %v210
    %v227 = vmul.f32 %v194, %v211
    %v228 = vmul.f32 %v195, %v212
    %v229 = vmul.f32 %v196, %v213
    %v230 = vmul.f32 %v197, %v214
    %v231 = vmul.f32 %v198, %v215
    %v232 = vmul.f32 %v199, %v216
    %v233 = vmul.f32 %v200, %v217
    %v234 = vmul.f32 %v201, %v218
    %v235 = vmul.f32 %v202, %v219
    %v236 = vld [vmem:[#allocation10] sm:$0xff]
    %v237 = vld [vmem:[#allocation10 + $0x8] sm:$0xff]
    %v238 = vld [vmem:[#allocation11] sm:$0xff]
    %v239 = vld [vmem:[#allocation11 + $0x8] sm:$0xff]
    %v240 = vmul.f32 %v236, %v238
    %v241 = vmul.f32 %v237, %v239
    %v242 = vlaneseq
    %v243 = vand.u32 %v242, 127
    %v244 = vadd.s32 %v243, 128
    %v245 = vlaneseq
    %v246 = vshrl.u32 %v245, 7
    %v247 = vadd.s32 %v246, 8
    %v248 = vadd.s32 %v246, 16
    %v249 = vadd.s32 %v246, 24
    %v250 = vadd.s32 %v246, 32
    %v251 = vadd.s32 %v246, 40
    %v252 = vadd.s32 %v246, 48
    %v253 = vadd.s32 %v246, 56
    %s254 = smul.u32 0, 64
    %v255 = vstv %s254
    %v256 = vadd.s32 %v246, %v255
    %v257 = vadd.s32 %v247, %v255
    %v258 = vadd.s32 %v248, %v255
    %v259 = vadd.s32 %v249, %v255
    %v260 = vadd.s32 %v250, %v255
    %v261 = vadd.s32 %v251, %v255
    %v262 = vadd.s32 %v252, %v255
    %v263 = vadd.s32 %v253, %v255
    %264 = vrot.lane.b32.xlu0 %v170, 1
    %v265 = vpop.permute.xlu0 %264
    %266 = vrot.lane.b32.xlu0 %v172, 1
    %v267 = vpop.permute.xlu0 %266
    %268 = vrot.lane.b32.xlu0 %v174, 1
    %v269 = vpop.permute.xlu0 %268
    %270 = vrot.lane.b32.xlu0 %v176, 1
    %v271 = vpop.permute.xlu0 %270
    %272 = vrot.lane.b32.xlu0 %v178, 1
    %v273 = vpop.permute.xlu0 %272
    %274 = vrot.lane.b32.xlu0 %v180, 1
    %v275 = vpop.permute.xlu0 %274
    %276 = vrot.lane.b32.xlu0 %v182, 1
    %v277 = vpop.permute.xlu0 %276
    %278 = vrot.lane.b32.xlu0 %v184, 1
    %v279 = vpop.permute.xlu0 %278
    %280 = vrot.lane.b32.xlu0 %v171, 1
    %v281 = vpop.permute.xlu0 %280
    %282 = vrot.lane.b32.xlu0 %v173, 1
    %v283 = vpop.permute.xlu0 %282
    %284 = vrot.lane.b32.xlu0 %v175, 1
    %v285 = vpop.permute.xlu0 %284
    %286 = vrot.lane.b32.xlu0 %v177, 1
    %v287 = vpop.permute.xlu0 %286
    %288 = vrot.lane.b32.xlu0 %v179, 1
    %v289 = vpop.permute.xlu0 %288
    %290 = vrot.lane.b32.xlu0 %v181, 1
    %v291 = vpop.permute.xlu0 %290
    %292 = vrot.lane.b32.xlu0 %v183, 1
    %v293 = vpop.permute.xlu0 %292
    %294 = vrot.lane.b32.xlu0 %v185, 1
    %v295 = vpop.permute.xlu0 %294
    %vm296 = vcmp.lt.s32.totalorder %v243, 1
    %v297 = vsel %vm296, %v265, %v281
    %v298 = vsel %vm296, %v267, %v283
    %v299 = vsel %vm296, %v269, %v285
    %v300 = vsel %vm296, %v271, %v287
    %v301 = vsel %vm296, %v273, %v289
    %v302 = vsel %vm296, %v275, %v291
    %v303 = vsel %vm296, %v277, %v293
    %v304 = vsel %vm296, %v279, %v295
    %v305 = vsel %vm296, %v281, %v265
    %v306 = vsel %vm296, %v283, %v267
    %v307 = vsel %vm296, %v285, %v269
    %v308 = vsel %vm296, %v287, %v271
    %v309 = vsel %vm296, %v289, %v273
    %v310 = vsel %vm296, %v291, %v275
    %v311 = vsel %vm296, %v293, %v277
    %v312 = vsel %vm296, %v295, %v279
    %vm313 = vcmp.lt.s32.totalorder %v243, 255
    %vm314 = vcmp.lt.s32.totalorder %v244, 255
    %v315 = vsel %vm313, 1, 0
    %v316 = vsel %vm314, 1, 0
    %vm317 = vcmp.eq.s32.totalorder %v315, 1
    %vm318 = vcmp.eq.s32.totalorder %v316, 1
    %v319 = vsel %vm317, %v170, 0.0
    %v320 = vsel %vm318, %v171, 0.0
    %v321 = vsel %vm317, %v172, 0.0
    %v322 = vsel %vm318, %v173, 0.0
    %v323 = vsel %vm317, %v174, 0.0
    %v324 = vsel %vm318, %v175, 0.0
    %v325 = vsel %vm317, %v176, 0.0
    %v326 = vsel %vm318, %v177, 0.0
    %v327 = vsel %vm317, %v178, 0.0
    %v328 = vsel %vm318, %v179, 0.0
    %v329 = vsel %vm317, %v180, 0.0
    %v330 = vsel %vm318, %v181, 0.0
    %v331 = vsel %vm317, %v182, 0.0
    %v332 = vsel %vm318, %v183, 0.0
    %v333 = vsel %vm317, %v184, 0.0
    %v334 = vsel %vm318, %v185, 0.0
    %vm335 = vcmp.gt.s32.totalorder %v243, 0
    %vm336 = vcmp.gt.s32.totalorder %v244, 0
    %v337 = vsel %vm335, 1, 0
    %v338 = vsel %vm336, 1, 0
    %vm339 = vcmp.eq.s32.totalorder %v337, 1
    %vm340 = vcmp.eq.s32.totalorder %v338, 1
    %v341 = vsel %vm339, %v305, 0.0
    %v342 = vsel %vm340, %v297, 0.0
    %v343 = vsel %vm339, %v306, 0.0
    %v344 = vsel %vm340, %v298, 0.0
    %v345 = vsel %vm339, %v307, 0.0
    %v346 = vsel %vm340, %v299, 0.0
    %v347 = vsel %vm339, %v308, 0.0
    %v348 = vsel %vm340, %v300, 0.0
    %v349 = vsel %vm339, %v309, 0.0
    %v350 = vsel %vm340, %v301, 0.0
    %v351 = vsel %vm339, %v310, 0.0
    %v352 = vsel %vm340, %v302, 0.0
    %v353 = vsel %vm339, %v311, 0.0
    %v354 = vsel %vm340, %v303, 0.0
    %v355 = vsel %vm339, %v312, 0.0
    %v356 = vsel %vm340, %v304, 0.0
    %v357 = vsub.f32 %v319, %v341
    %v358 = vsub.f32 %v320, %v342
    %v359 = vsub.f32 %v321, %v343
    %v360 = vsub.f32 %v322, %v344
    %v361 = vsub.f32 %v323, %v345
    %v362 = vsub.f32 %v324, %v346
    %v363 = vsub.f32 %v325, %v347
    %v364 = vsub.f32 %v326, %v348
    %v365 = vsub.f32 %v327, %v349
    %v366 = vsub.f32 %v328, %v350
    %v367 = vsub.f32 %v329, %v351
    %v368 = vsub.f32 %v330, %v352
    %v369 = vsub.f32 %v331, %v353
    %v370 = vsub.f32 %v332, %v354
    %v371 = vsub.f32 %v333, %v355
    %v372 = vsub.f32 %v334, %v356
    %v373 = vrot.slane %v220, 7
    %v374 = vrot.slane %v221, 7
    %v375 = vrot.slane %v222, 7
    %v376 = vrot.slane %v223, 7
    %v377 = vrot.slane %v224, 7
    %v378 = vrot.slane %v225, 7
    %v379 = vrot.slane %v226, 7
    %v380 = vrot.slane %v227, 7
    %v381 = vrot.slane %v228, 7
    %v382 = vrot.slane %v229, 7
    %v383 = vrot.slane %v230, 7
    %v384 = vrot.slane %v231, 7
    %v385 = vrot.slane %v232, 7
    %v386 = vrot.slane %v233, 7
    %v387 = vrot.slane %v234, 7
    %v388 = vrot.slane %v235, 7
    %vm389 = vcmp.lt.s32.totalorder %v246, 1
    %v390 = vsel %vm389, %v385, %v387
    %v391 = vsel %vm389, %v386, %v388
    %v392 = vsel %vm389, %v383, %v385
    %v393 = vsel %vm389, %v384, %v386
    %v394 = vsel %vm389, %v381, %v383
    %v395 = vsel %vm389, %v382, %v384
    %v396 = vsel %vm389, %v379, %v381
    %v397 = vsel %vm389, %v380, %v382
    %v398 = vsel %vm389, %v377, %v379
    %v399 = vsel %vm389, %v378, %v380
    %v400 = vsel %vm389, %v375, %v377
    %v401 = vsel %vm389, %v376, %v378
    %v402 = vsel %vm389, %v373, %v375
    %v403 = vsel %vm389, %v374, %v376
    %v404 = vsel %vm389, %v387, %v373
    %v405 = vsel %vm389, %v388, %v374
    %vm406 = vcmp.eq.s32.totalorder %v246, 0
    %vm407 = vcmp.eq.s32.totalorder %v247, 0
    %vm408 = vcmp.eq.s32.totalorder %v248, 0
    %vm409 = vcmp.eq.s32.totalorder %v249, 0
    %vm410 = vcmp.eq.s32.totalorder %v250, 0
    %vm411 = vcmp.eq.s32.totalorder %v251, 0
    %vm412 = vcmp.eq.s32.totalorder %v252, 0
    %vm413 = vcmp.eq.s32.totalorder %v253, 0
    %v414 = vsel %vm406, 1, 0
    %v415 = vsel %vm407, 1, 0
    %v416 = vsel %vm408, 1, 0
    %v417 = vsel %vm409, 1, 0
    %v418 = vsel %vm410, 1, 0
    %v419 = vsel %vm411, 1, 0
    %v420 = vsel %vm412, 1, 0
    %v421 = vsel %vm413, 1, 0
    %vm422 = vcmp.eq.s32.totalorder %v414, 1
    %vm423 = vcmp.eq.s32.totalorder %v415, 1
    %vm424 = vcmp.eq.s32.totalorder %v416, 1
    %vm425 = vcmp.eq.s32.totalorder %v417, 1
    %vm426 = vcmp.eq.s32.totalorder %v418, 1
    %vm427 = vcmp.eq.s32.totalorder %v419, 1
    %vm428 = vcmp.eq.s32.totalorder %v420, 1
    %vm429 = vcmp.eq.s32.totalorder %v421, 1
    %v430 = vperm.slane %v240, 7
    %v431 = vperm.slane %v241, 7
    %v432 = vsel %vm422, %v430, %v404
    %v433 = vsel %vm422, %v431, %v405
    %v434 = vsel %vm423, %v430, %v402
    %v435 = vsel %vm423, %v431, %v403
    %v436 = vsel %vm424, %v430, %v400
    %v437 = vsel %vm424, %v431, %v401
    %v438 = vsel %vm425, %v430, %v398
    %v439 = vsel %vm425, %v431, %v399
    %v440 = vsel %vm426, %v430, %v396
    %v441 = vsel %vm426, %v431, %v397
    %v442 = vsel %vm427, %v430, %v394
    %v443 = vsel %vm427, %v431, %v395
    %v444 = vsel %vm428, %v430, %v392
    %v445 = vsel %vm428, %v431, %v393
    %v446 = vsel %vm429, %v430, %v390
    %v447 = vsel %vm429, %v431, %v391
    %vm448 = vcmp.lt.s32.totalorder %v256, 63
    %vm449 = vcmp.lt.s32.totalorder %v257, 63
    %vm450 = vcmp.lt.s32.totalorder %v258, 63
    %vm451 = vcmp.lt.s32.totalorder %v259, 63
    %vm452 = vcmp.lt.s32.totalorder %v260, 63
    %vm453 = vcmp.lt.s32.totalorder %v261, 63
    %vm454 = vcmp.lt.s32.totalorder %v262, 63
    %vm455 = vcmp.lt.s32.totalorder %v263, 63
    %v456 = vsel %vm448, 1, 0
    %v457 = vsel %vm449, 1, 0
    %v458 = vsel %vm450, 1, 0
    %v459 = vsel %vm451, 1, 0
    %v460 = vsel %vm452, 1, 0
    %v461 = vsel %vm453, 1, 0
    %v462 = vsel %vm454, 1, 0
    %v463 = vsel %vm455, 1, 0
    %vm464 = vcmp.eq.s32.totalorder %v456, 1
    %vm465 = vcmp.eq.s32.totalorder %v457, 1
    %vm466 = vcmp.eq.s32.totalorder %v458, 1
    %vm467 = vcmp.eq.s32.totalorder %v459, 1
    %vm468 = vcmp.eq.s32.totalorder %v460, 1
    %vm469 = vcmp.eq.s32.totalorder %v461, 1
    %vm470 = vcmp.eq.s32.totalorder %v462, 1
    %vm471 = vcmp.eq.s32.totalorder %v463, 1
    %v472 = vsel %vm464, %v220, 0.0
    %v473 = vsel %vm464, %v221, 0.0
    %v474 = vsel %vm465, %v222, 0.0
    %v475 = vsel %vm465, %v223, 0.0
    %v476 = vsel %vm466, %v224, 0.0
    %v477 = vsel %vm466, %v225, 0.0
    %v478 = vsel %vm467, %v226, 0.0
    %v479 = vsel %vm467, %v227, 0.0
    %v480 = vsel %vm468, %v228, 0.0
    %v481 = vsel %vm468, %v229, 0.0
    %v482 = vsel %vm469, %v230, 0.0
    %v483 = vsel %vm469, %v231, 0.0
    %v484 = vsel %vm470, %v232, 0.0
    %v485 = vsel %vm470, %v233, 0.0
    %v486 = vsel %vm471, %v234, 0.0
    %v487 = vsel %vm471, %v235, 0.0
    %vm488 = vcmp.gt.s32.totalorder %v256, 0
    %vm489 = vcmp.gt.s32.totalorder %v257, 0
    %vm490 = vcmp.gt.s32.totalorder %v258, 0
    %vm491 = vcmp.gt.s32.totalorder %v259, 0
    %vm492 = vcmp.gt.s32.totalorder %v260, 0
    %vm493 = vcmp.gt.s32.totalorder %v261, 0
    %vm494 = vcmp.gt.s32.totalorder %v262, 0
    %vm495 = vcmp.gt.s32.totalorder %v263, 0
    %v496 = vsel %vm488, 1, 0
    %v497 = vsel %vm489, 1, 0
    %v498 = vsel %vm490, 1, 0
    %v499 = vsel %vm491, 1, 0
    %v500 = vsel %vm492, 1, 0
    %v501 = vsel %vm493, 1, 0
    %v502 = vsel %vm494, 1, 0
    %v503 = vsel %vm495, 1, 0
    %vm504 = vcmp.eq.s32.totalorder %v496, 1
    %vm505 = vcmp.eq.s32.totalorder %v497, 1
    %vm506 = vcmp.eq.s32.totalorder %v498, 1
    %vm507 = vcmp.eq.s32.totalorder %v499, 1
    %vm508 = vcmp.eq.s32.totalorder %v500, 1
    %vm509 = vcmp.eq.s32.totalorder %v501, 1
    %vm510 = vcmp.eq.s32.totalorder %v502, 1
    %vm511 = vcmp.eq.s32.totalorder %v503, 1
    %v512 = vsel %vm504, %v432, 0.0
    %v513 = vsel %vm504, %v433, 0.0
    %v514 = vsel %vm505, %v434, 0.0
    %v515 = vsel %vm505, %v435, 0.0
    %v516 = vsel %vm506, %v436, 0.0
    %v517 = vsel %vm506, %v437, 0.0
    %v518 = vsel %vm507, %v438, 0.0
    %v519 = vsel %vm507, %v439, 0.0
    %v520 = vsel %vm508, %v440, 0.0
    %v521 = vsel %vm508, %v441, 0.0
    %v522 = vsel %vm509, %v442, 0.0
    %v523 = vsel %vm509, %v443, 0.0
    %v524 = vsel %vm510, %v444, 0.0
    %v525 = vsel %vm510, %v445, 0.0
    %v526 = vsel %vm511, %v446, 0.0
    %v527 = vsel %vm511, %v447, 0.0
    %v528 = vsub.f32 %v472, %v512
    %v529 = vsub.f32 %v473, %v513
    %v530 = vsub.f32 %v474, %v514
    %v531 = vsub.f32 %v475, %v515
    %v532 = vsub.f32 %v476, %v516
    %v533 = vsub.f32 %v477, %v517
    %v534 = vsub.f32 %v478, %v518
    %v535 = vsub.f32 %v479, %v519
    %v536 = vsub.f32 %v480, %v520
    %v537 = vsub.f32 %v481, %v521
    %v538 = vsub.f32 %v482, %v522
    %v539 = vsub.f32 %v483, %v523
    %v540 = vsub.f32 %v484, %v524
    %v541 = vsub.f32 %v485, %v525
    %v542 = vsub.f32 %v486, %v526
    %v543 = vsub.f32 %v487, %v527
    %v544 = vld [vmem:[#allocation2] sm:$0xff]
    %v545 = vld [vmem:[#allocation2 + $0x8] sm:$0xff]
    %v546 = vld [vmem:[#allocation2 + $0x10] sm:$0xff]
    %v547 = vld [vmem:[#allocation2 + $0x18] sm:$0xff]
    %v548 = vld [vmem:[#allocation2 + $0x20] sm:$0xff]
    %v549 = vld [vmem:[#allocation2 + $0x28] sm:$0xff]
    %v550 = vld [vmem:[#allocation2 + $0x30] sm:$0xff]
    %v551 = vld [vmem:[#allocation2 + $0x38] sm:$0xff]
    %v552 = vld [vmem:[#allocation2 + $0x40] sm:$0xff]
    %v553 = vld [vmem:[#allocation2 + $0x48] sm:$0xff]
    %v554 = vld [vmem:[#allocation2 + $0x50] sm:$0xff]
    %v555 = vld [vmem:[#allocation2 + $0x58] sm:$0xff]
    %v556 = vld [vmem:[#allocation2 + $0x60] sm:$0xff]
    %v557 = vld [vmem:[#allocation2 + $0x68] sm:$0xff]
    %v558 = vld [vmem:[#allocation2 + $0x70] sm:$0xff]
    %v559 = vld [vmem:[#allocation2 + $0x78] sm:$0xff]
    %v560 = vadd.f32 %v357, %v528
    %v561 = vadd.f32 %v358, %v529
    %v562 = vadd.f32 %v359, %v530
    %v563 = vadd.f32 %v360, %v531
    %v564 = vadd.f32 %v361, %v532
    %v565 = vadd.f32 %v362, %v533
    %v566 = vadd.f32 %v363, %v534
    %v567 = vadd.f32 %v364, %v535
    %v568 = vadd.f32 %v365, %v536
    %v569 = vadd.f32 %v366, %v537
    %v570 = vadd.f32 %v367, %v538
    %v571 = vadd.f32 %v368, %v539
    %v572 = vadd.f32 %v369, %v540
    %v573 = vadd.f32 %v370, %v541
    %v574 = vadd.f32 %v371, %v542
    %v575 = vadd.f32 %v372, %v543
    %v576 = vmul.f32 %v560, 0.01
    %v577 = vmul.f32 %v561, 0.01
    %v578 = vmul.f32 %v562, 0.01
    %v579 = vmul.f32 %v563, 0.01
    %v580 = vmul.f32 %v564, 0.01
    %v581 = vmul.f32 %v565, 0.01
    %v582 = vmul.f32 %v566, 0.01
    %v583 = vmul.f32 %v567, 0.01
    %v584 = vmul.f32 %v568, 0.01
    %v585 = vmul.f32 %v569, 0.01
    %v586 = vmul.f32 %v570, 0.01
    %v587 = vmul.f32 %v571, 0.01
    %v588 = vmul.f32 %v572, 0.01
    %v589 = vmul.f32 %v573, 0.01
    %v590 = vmul.f32 %v574, 0.01
    %v591 = vmul.f32 %v575, 0.01
    %v592 = vadd.f32 %v544, %v576
    %v593 = vadd.f32 %v545, %v577
    %v594 = vadd.f32 %v546, %v578
    %v595 = vadd.f32 %v547, %v579
    %v596 = vadd.f32 %v548, %v580
    %v597 = vadd.f32 %v549, %v581
    %v598 = vadd.f32 %v550, %v582
    %v599 = vadd.f32 %v551, %v583
    %v600 = vadd.f32 %v552, %v584
    %v601 = vadd.f32 %v553, %v585
    %v602 = vadd.f32 %v554, %v586
    %v603 = vadd.f32 %v555, %v587
    %v604 = vadd.f32 %v556, %v588
    %v605 = vadd.f32 %v557, %v589
    %v606 = vadd.f32 %v558, %v590
    %v607 = vadd.f32 %v559, %v591
    %v608 = vld [vmem:[#allocation7] sm:$0xff]
    %v609 = vld [vmem:[#allocation7 + $0x8] sm:$0xff]
    %v610 = vld [vmem:[#allocation7 + $0x10] sm:$0xff]
    %v611 = vld [vmem:[#allocation7 + $0x18] sm:$0xff]
    %v612 = vld [vmem:[#allocation7 + $0x20] sm:$0xff]
    %v613 = vld [vmem:[#allocation7 + $0x28] sm:$0xff]
    %v614 = vld [vmem:[#allocation7 + $0x30] sm:$0xff]
    %v615 = vld [vmem:[#allocation7 + $0x38] sm:$0xff]
    %v616 = vld [vmem:[#allocation7 + $0x40] sm:$0xff]
    %v617 = vld [vmem:[#allocation7 + $0x48] sm:$0xff]
    %v618 = vld [vmem:[#allocation7 + $0x50] sm:$0xff]
    %v619 = vld [vmem:[#allocation7 + $0x58] sm:$0xff]
    %v620 = vld [vmem:[#allocation7 + $0x60] sm:$0xff]
    %v621 = vld [vmem:[#allocation7 + $0x68] sm:$0xff]
    %v622 = vld [vmem:[#allocation7 + $0x70] sm:$0xff]
    %v623 = vld [vmem:[#allocation7 + $0x78] sm:$0xff]
    %v624 = vmul.f32 %v608, 0.07
    %v625 = vmul.f32 %v609, 0.07
    %v626 = vmul.f32 %v610, 0.07
    %v627 = vmul.f32 %v611, 0.07
    %v628 = vmul.f32 %v612, 0.07
    %v629 = vmul.f32 %v613, 0.07
    %v630 = vmul.f32 %v614, 0.07
    %v631 = vmul.f32 %v615, 0.07
    %v632 = vmul.f32 %v616, 0.07
    %v633 = vmul.f32 %v617, 0.07
    %v634 = vmul.f32 %v618, 0.07
    %v635 = vmul.f32 %v619, 0.07
    %v636 = vmul.f32 %v620, 0.07
    %v637 = vmul.f32 %v621, 0.07
    %v638 = vmul.f32 %v622, 0.07
    %v639 = vmul.f32 %v623, 0.07
    %v640 = vadd.f32 %v592, %v624
    %v641 = vadd.f32 %v593, %v625
    %v642 = vadd.f32 %v594, %v626
    %v643 = vadd.f32 %v595, %v627
    %v644 = vadd.f32 %v596, %v628
    %v645 = vadd.f32 %v597, %v629
    %v646 = vadd.f32 %v598, %v630
    %v647 = vadd.f32 %v599, %v631
    %v648 = vadd.f32 %v600, %v632
    %v649 = vadd.f32 %v601, %v633
    %v650 = vadd.f32 %v602, %v634
    %v651 = vadd.f32 %v603, %v635
    %v652 = vadd.f32 %v604, %v636
    %v653 = vadd.f32 %v605, %v637
    %v654 = vadd.f32 %v606, %v638
    %v655 = vadd.f32 %v607, %v639
    %v656 = vmul.f32 %v640, 0.93457943
    %v657 = vmul.f32 %v641, 0.93457943
    %v658 = vmul.f32 %v642, 0.93457943
    %v659 = vmul.f32 %v643, 0.93457943
    %v660 = vmul.f32 %v644, 0.93457943
    %v661 = vmul.f32 %v645, 0.93457943
    %v662 = vmul.f32 %v646, 0.93457943
    %v663 = vmul.f32 %v647, 0.93457943
    %v664 = vmul.f32 %v648, 0.93457943
    %v665 = vmul.f32 %v649, 0.93457943
    %v666 = vmul.f32 %v650, 0.93457943
    %v667 = vmul.f32 %v651, 0.93457943
    %v668 = vmul.f32 %v652, 0.93457943
    %v669 = vmul.f32 %v653, 0.93457943
    %v670 = vmul.f32 %v654, 0.93457943
    %v671 = vmul.f32 %v655, 0.93457943
    %672 = vst [vmem:[#allocation13] sm:$0xff] %v656
    %673 = vst [vmem:[#allocation13 + $0x8] sm:$0xff] %v657
    %674 = vst [vmem:[#allocation13 + $0x10] sm:$0xff] %v658
    %675 = vst [vmem:[#allocation13 + $0x18] sm:$0xff] %v659
    %676 = vst [vmem:[#allocation13 + $0x20] sm:$0xff] %v660
    %677 = vst [vmem:[#allocation13 + $0x28] sm:$0xff] %v661
    %678 = vst [vmem:[#allocation13 + $0x30] sm:$0xff] %v662
    %679 = vst [vmem:[#allocation13 + $0x38] sm:$0xff] %v663
    %680 = vst [vmem:[#allocation13 + $0x40] sm:$0xff] %v664
    %681 = vst [vmem:[#allocation13 + $0x48] sm:$0xff] %v665
    %682 = vst [vmem:[#allocation13 + $0x50] sm:$0xff] %v666
    %683 = vst [vmem:[#allocation13 + $0x58] sm:$0xff] %v667
    %684 = vst [vmem:[#allocation13 + $0x60] sm:$0xff] %v668
    %685 = vst [vmem:[#allocation13 + $0x68] sm:$0xff] %v669
    %686 = vst [vmem:[#allocation13 + $0x70] sm:$0xff] %v670
    %687 = vst [vmem:[#allocation13 + $0x78] sm:$0xff] %v671
    // Predicated region
    $region50: #{tpu_custom_call.1} parent=1 // pred_check
      _
    $region51: #{tpu_custom_call.1} parent=1 // pred_check_branch
      %689 = sbr.rel (0) target = $region53
    $region52: #{tpu_custom_call.1} parent=1 // pred_region
      %691 = vsyncadd [#allocation4], 0
      %s692 = sshll.u32 [#allocation13], 4
      %s693 = int_to_ptr.vmem [resolvable:$true] %s692
      %s694 = sshll.u32 %s6, 4
      %s695 = int_to_ptr.hbm [resolvable:$true] %s694
      %700 = dma.vmem_to_hbm [thread:$0]  %s693, 2048, %s695, [#allocation4], 256, 256, 16
    $region53: #{tpu_custom_call.1} parent=1 // pred_fallthru
      _
    // Predicated region
    $region54: #{tpu_custom_call.1} parent=1 // pred_check
      _
    $region55: #{tpu_custom_call.1} parent=1 // pred_check_branch
      %702 = sbr.rel (0) target = $region57
    $region56: #{tpu_custom_call.1} parent=1 // pred_region
      %704 = dma.done [#allocation4], 2048
    $region57: #{tpu_custom_call.1} parent=1 // pred_fallthru
      _
    %705 = vsyncpa [#allocation3], 1
    %706 = vsyncpa [#allocation6], 1
    %707 = vsyncpa [#allocation9], 1
    %708 = vsyncpa [#allocation12], 1
    %709 = vsyncpa [#allocation4], 1

</llo_original>
